<compile_context>
chip_gen: v5e
topology: v5e:2x2
jax: 0.10.0
libtpu: 0.0.40
codegen_flags: <defaults>
</compile_context>

<pallas_src>
import functools
import math

import jax
import jax.numpy as jnp
from jax.experimental import pallas as pl
from jax.experimental.pallas import tpu as pltpu

_LANE = 128          # points per packed row
_ROW = 2 * _LANE     # interleaved (u, v) values per packed row


# ----------------------------- Pallas kernel ------------------------------- #

def _surface_kernel(x_ref, o01_ref, o2_ref):
    """One (TR, 256) tile.  Lanes 2p / 2p+1 of a row hold (u_p, v_p) of point p.

    Writes:
      o01: lane 2p -> S0_p = sin(u)cos(v),  lane 2p+1 -> S1_p = sin(u)sin(v)
      o2 : lanes 2p and 2p+1 both hold S2_p = cos(u)   (pair-duplicated)
    """
    x = x_ref[...].astype(jnp.float32)      # compute in f32 even for bf16 I/O
    sx = jnp.sin(x)                         # [sin u | sin v] lane-interleaved
    cx = jnp.cos(x)                         # [cos u | cos v] lane-interleaved

    lane = jax.lax.broadcasted_iota(jnp.int32, x.shape, 1)
    even = (lane & 1) == 0                  # True at u lanes (2p)

    # w[2p] = sin u_p, w[2p+1] = cos v_p.  Swapping the two lanes of each pair
    # gives w_swap[2p] = cos v_p, w_swap[2p+1] = sin u_p.  The rolls (by +1 and
    # by 255 == -1 mod 256) only feed lanes of the opposite parity, so the
    # wrap-around lanes never reach the selected result.
    w = jnp.where(even, sx, cx)
    w_swap = jnp.where(even,
                       pltpu.roll(w, _ROW - 1, 1),   # lane 2p   <- lane 2p+1
                       pltpu.roll(w, 1, 1))          # lane 2p+1 <- lane 2p

    # lane 2p:   sin u_p * cos v_p = S0_p ;  lane 2p+1: sin v_p * sin u_p = S1_p
    s01 = sx * w_swap
    # S2 = cos u_p, duplicated into both lanes of the pair (wrapper keeps one).
    s2 = jnp.where(even, cx, pltpu.roll(cx, 1, 1))

    o01_ref[...] = s01.astype(o01_ref.dtype)
    o2_ref[...] = s2.astype(o2_ref.dtype)


# ------------------------------- wrapper ------------------------------------ #

def _round_up(x, m):
    return ((x + m - 1) // m) * m


def _cdiv(a, b):
    return -(-a // b)


@functools.partial(jax.jit, static_argnames=("block_rows",))
def surface_forward(X, block_rows=2048):
    """Pallas implementation of Surface.forward for the sphere component tuple.

    X: (..., 2) float array.  Returns (..., 3), same dtype as X.
    """
    if X.shape[-1] != 2:
        raise ValueError("Surface.forward expects trailing dim of size 2")
    dtype = X.dtype
    lead_shape = X.shape[:-1]
    K = math.prod(lead_shape) if lead_shape else 1

    if K == 0:                                  # degenerate empty input
        return jnp.zeros((*lead_shape, 3), dtype=dtype)

    # --- block-row selection (rows of 128 points each) ---------------------- #
    R = _cdiv(K, _LANE)
    R16 = _round_up(R, 16)                      # 16-row granularity (bf16-safe)
    n = max(1, _cdiv(R16, max(int(block_rows), 16)))
    if n == 1 and R16 >= 1024:
        n = 2                                   # give both v7x TensorCores work
    tr = _round_up(_cdiv(R16, n), 16)           # balanced blocks -> tiny padding
    if R16 >= 512:
        tr = max(tr, 512)                       # DMA-efficiency floor
    tr = min(tr, R16)
    n = _cdiv(R16, tr)
    Rp = n * tr

    # --- input: natural layout, pure view when aligned ---------------------- #
    xf = X.reshape(-1)                          # [u0, v0, u1, v1, ...] (free view)
    need = Rp * _ROW
    if need != xf.size:
        # Only ragged / unaligned point counts pay this single pad pass.
        xf = jnp.pad(xf, (0, need - xf.size))
    xg = xf.reshape(Rp, _ROW)                   # (Rp, 256), still a free view

    out01, out2 = pl.pallas_call(
        _surface_kernel,
        out_shape=(jax.ShapeDtypeStruct((Rp, _ROW), dtype),
                   jax.ShapeDtypeStruct((Rp, _ROW), dtype)),
        grid=(n,),
        in_specs=[pl.BlockSpec((tr, _ROW), lambda i: (i, 0))],
        out_specs=(pl.BlockSpec((tr, _ROW), lambda i: (i, 0)),
                   pl.BlockSpec((tr, _ROW), lambda i: (i, 0))),
        compiler_params=pltpu.CompilerParams(
            dimension_semantics=("parallel",),
            vmem_limit_bytes=48 * 1024 * 1024,   # > v5e's 16 MiB scoped default
        ),
    )(xg)

    # out01 flat = [S0_0, S1_0, S0_1, S1_1, ...]  ->  (K, 2) is a free view.
    p01 = out01.reshape(Rp * _LANE, 2)[:K]
    p2 = out2.reshape(Rp * _LANE, 2)[:K, :1]
    # TODO(synk): the final (K, 3) channel interleave stays as one fused XLA
    # concatenate; a fully fused store would need a stride-3 lane scatter /
    # lane gather, which has no robust Pallas/Mosaic primitive today.
    Y = jnp.concatenate([p01, p2], axis=1)
    return Y.reshape(*lead_shape, 3)


# --------------------------- pure-JAX reference ----------------------------- #

def surface_forward_ref(X):
    u = X[..., 0]
    v = X[..., 1]
    s0 = jnp.sin(u) * jnp.cos(v)
    s1 = jnp.sin(u) * jnp.sin(v)
    s2 = jnp.cos(u)
    return jnp.concatenate(
        [s0[..., None], s1[..., None], s2[..., None]], axis=-1
    )


# --------------------------------- main ------------------------------------- #

if __name__ == "__main__":
    key = jax.random.PRNGKey(0)

    # Aligned case (K = 2048 points): exercises the zero-copy input path.
    X = jax.random.uniform(
        key, (2, 8, 128, 2), dtype=jnp.float32, minval=0.0, maxval=2.0 * jnp.pi
    )
    y = surface_forward(X)
    jax.block_until_ready(y)
    y_ref = surface_forward_ref(X)
    assert y.shape == (2, 8, 128, 3), y.shape
    assert y.dtype == X.dtype
    assert jnp.allclose(y, y_ref, atol=1e-5, rtol=1e-5), (
        float(jnp.max(jnp.abs(y - y_ref)))
    )

    # Ragged case (K = 3960, not a multiple of 128) with a tiny block_rows so
    # the grid has multiple steps: exercises padding + multi-tile pipeline.
    key2 = jax.random.PRNGKey(1)
    X2 = jax.random.uniform(
        key2, (3, 33, 40, 2), dtype=jnp.float32, minval=-3.0, maxval=3.0
    )
    y2 = surface_forward(X2, block_rows=16)
    jax.block_until_ready(y2)
    y2_ref = surface_forward_ref(X2)
    assert y2.shape == (3, 33, 40, 3), y2.shape
    assert jnp.allclose(y2, y2_ref, atol=1e-5, rtol=1e-5), (
        float(jnp.max(jnp.abs(y2 - y2_ref)))
    )

    print("KERNEL_OK")
</pallas_src>

<mosaic_0001>
module attributes {stable_mosaic.version = 11 : i64} {
  func.func @_surface_kernel(%arg0: i32, %arg1: memref<16x256xf32, #tpu.memory_space<vmem>>, %arg2: memref<16x256xf32, #tpu.memory_space<vmem>>, %arg3: memref<16x256xf32, #tpu.memory_space<vmem>>) attributes {dimension_semantics = [#tpu.dimension_semantics<parallel>], iteration_bounds = array<i64: 1>, scalar_prefetch = 0 : i64, scratch_operands = 0 : i64, tpu.core_type = #tpu.core_type<tc>, window_params = [{transform_indices = @transform_0, window_bounds = array<i64: 16, 256>}, {transform_indices = @transform_1, window_bounds = array<i64: 16, 256>}, {transform_indices = @transform_2, window_bounds = array<i64: 16, 256>}]} {
    %c0 = arith.constant 0 : index
    %c0_0 = arith.constant 0 : index
    %0 = vector.load %arg1[%c0, %c0_0] : memref<16x256xf32, #tpu.memory_space<vmem>>, vector<16x256xf32>
    %1 = math.sin %0 : vector<16x256xf32>
    %2 = math.cos %0 : vector<16x256xf32>
    %3 = tpu.iota {dimensions = array<i32: 1>} : vector<16x256xi32>
    %c1_i32 = arith.constant 1 : i32
    %4 = vector.broadcast %c1_i32 : i32 to vector<16x256xi32>
    %5 = arith.andi %3, %4 : vector<16x256xi32>
    %c0_i32 = arith.constant 0 : i32
    %6 = vector.broadcast %c0_i32 : i32 to vector<16x256xi32>
    %7 = arith.cmpi eq, %5, %6 : vector<16x256xi32>
    %8 = arith.select %7, %1, %2 : vector<16x256xi1>, vector<16x256xf32>
    %c255_i32 = arith.constant 255 : i32
    %9 = tpu.dynamic_rotate %8 by %c255_i32 dim 1 : vector<16x256xf32>, i32 -> vector<16x256xf32>
    %c1_i32_1 = arith.constant 1 : i32
    %10 = tpu.dynamic_rotate %8 by %c1_i32_1 dim 1 : vector<16x256xf32>, i32 -> vector<16x256xf32>
    %11 = arith.select %7, %9, %10 : vector<16x256xi1>, vector<16x256xf32>
    %12 = arith.mulf %1, %11 : vector<16x256xf32>
    %c1_i32_2 = arith.constant 1 : i32
    %13 = tpu.dynamic_rotate %2 by %c1_i32_2 dim 1 : vector<16x256xf32>, i32 -> vector<16x256xf32>
    %14 = arith.select %7, %2, %13 : vector<16x256xi1>, vector<16x256xf32>
    %c0_3 = arith.constant 0 : index
    %c0_4 = arith.constant 0 : index
    %15 = vector.load %arg2[%c0_3, %c0_4] : memref<16x256xf32, #tpu.memory_space<vmem>>, vector<16x256xf32>
    tpu.vector_store %arg2[%c0_3, %c0_4], %12 {strides = array<i32>} : memref<16x256xf32, #tpu.memory_space<vmem>>, vector<16x256xf32>,
    %c0_5 = arith.constant 0 : index
    %c0_6 = arith.constant 0 : index
    %16 = vector.load %arg3[%c0_5, %c0_6] : memref<16x256xf32, #tpu.memory_space<vmem>>, vector<16x256xf32>
    tpu.vector_store %arg3[%c0_5, %c0_6], %14 {strides = array<i32>} : memref<16x256xf32, #tpu.memory_space<vmem>>, vector<16x256xf32>,
    return
  }
  func.func @transform_0(%arg0: i32) -> (i32, i32) {
    %c0_i32 = arith.constant 0 : i32
    %c0_i32_0 = arith.constant 0 : i32
    return %arg0, %c0_i32 : i32, i32
  }
  func.func @transform_1(%arg0: i32) -> (i32, i32) {
    %c0_i32 = arith.constant 0 : i32
    %c0_i32_0 = arith.constant 0 : i32
    return %arg0, %c0_i32 : i32, i32
  }
  func.func @transform_2(%arg0: i32) -> (i32, i32) {
    %c0_i32 = arith.constant 0 : i32
    %c0_i32_0 = arith.constant 0 : i32
    return %arg0, %c0_i32 : i32, i32
  }
}

</mosaic_0001>

<llo_original>
// kernel: surface_forward.1
$region0: #{surface_forward.1}
  #allocation0 [shape = 'u32[]', space=smem, size = 0x4, offset = 0x4, fixed_abs, tag = 'smem constant byte address 0x4 - core index']
  #allocation1 [shape = 'u32[72,128]{1,0:T(1,128)}', space=vmem, size = 0x9000, scoped, tag = 'internal scratch']
  %s0 = inlined_call_operand.vmem [shape: f32[16,256], index: 0, kind: input, shape index: {}]
  %s1 = inlined_call_operand.vmem [shape: f32[16,256], index: 1, kind: output, shape index: {0}]
  %s2 = inlined_call_operand.vmem [shape: f32[16,256], index: 2, kind: output, shape index: {1}]
  %3 = xla_tuple %s1, %s2
  %s4 = sld [smem:[#allocation0]]
  $region22: #{surface_forward.1} parent=0
    _
  %s6 = ssub.s32 1, %s4
  %s7 = scalar_select 0, %s6, %s4
  // Predicated region
  $region2: #{surface_forward.1} parent=0 // pred_check
    _
  $region3: #{surface_forward.1} parent=0 // pred_check_branch
    %9 = sbr.rel (0) target = $region5
  $region4: #{surface_forward.1} parent=0 // pred_region
    _
  $region5: #{surface_forward.1} parent=0 // pred_fallthru
    _
  %v10 = vld [vmem:[%s0] sm:$0xff]
  %v11 = vld [vmem:[%s0 + $0x8] sm:$0xff]
  %v12 = vld [vmem:[%s0 + $0x10] sm:$0xff]
  %v13 = vld [vmem:[%s0 + $0x18] sm:$0xff]
  %v14 = vand.u32 2147483647, %v10
  %vm15 = vcmp.le.f32.partialorder %v14, 0.7853982
  %vm16 = vcmp.lt.s32.totalorder %v10, 0
  %v17 = vand.u32 %v10, 2139095040
  %v18 = vshrl.u32 %v17, 23
  %v19 = vsub.s32 %v18, 127
  %v20 = vand.u32 2147483647, %v10
  %v21 = vand.u32 %v20, 8388607
  %v22 = vor.u32 %v21, 8388608
  %v23 = vsub.s32 0, %v22
  %v24 = vadd.s32 %v19, 1
  %vm25 = vcmp.gt.s32.totalorder %v24, 0
  %v26 = vsel %vm25, %v24, 0
  %v27 = vshrl.u32 %v26, 5
  %v28 = vand.u32 %v26, 31
  %v29 = vsub.s32 32, %v28
  %v30 = vshrl.u32 683565275, %v29
  %v31 = vshll.u32 683565275, %v28
  %v32 = vshrl.u32 2475754826, %v29
  %v33 = vor.u32 %v31, %v32
  %v34 = vshll.u32 2475754826, %v28
  %v35 = vshrl.u32 2131351028, %v29
  %v36 = vor.u32 %v34, %v35
  %v37 = vshll.u32 2131351028, %v28
  %v38 = vshrl.u32 2102212464, %v29
  %v39 = vor.u32 %v37, %v38
  %v40 = vshll.u32 2102212464, %v28
  %v41 = vshrl.u32 920167782, %v29
  %v42 = vor.u32 %v40, %v41
  %v43 = vshll.u32 920167782, %v28
  %v44 = vshrl.u32 1326507024, %v29
  %v45 = vor.u32 %v43, %v44
  %vm46 = vcmp.lt.s32.totalorder %v27, 1
  %vm47 = vcmp.lt.s32.totalorder %v27, 2
  %vm48 = vcmp.lt.s32.totalorder %v27, 3
  %vm49 = vcmp.lt.s32.totalorder %v27, 4
  %v50 = vsel %vm46, %v30, %v33
  %v51 = vsel %vm49, %v39, 2102212464
  %v52 = vsel %vm48, %v36, %v51
  %v53 = vsel %vm47, %v50, %v52
  %v54 = vsel %vm46, %v33, %v36
  %v55 = vsel %vm49, %v42, 920167782
  %v56 = vsel %vm48, %v39, %v55
  %v57 = vsel %vm47, %v54, %v56
  %v58 = vsel %vm46, %v36, %v39
  %v59 = vsel %vm49, %v45, 1326507024
  %v60 = vsel %vm48, %v42, %v59
  %v61 = vsel %vm47, %v58, %v60
  %v62 = vshll.u32 %v22, 8
  %v63 = vand.u32 %v62, 65535
  %v64 = vshrl.u32 %v62, 16
  %v65 = vand.u32 %v61, 65535
  %v66 = vshrl.u32 %v61, 16
  %v67 = vmul.u32 %v63, %v65
  %v68 = vmul.u32 %v63, %v66
  %v69 = vmul.u32 %v64, %v65
  %v70 = vmul.u32 %v64, %v66
  %v71 = vshll.u32 %v68, 16
  %v72 = vshrl.u32 %v68, 16
  %v73 = vshll.u32 %v69, 16
  %v74 = vshrl.u32 %v69, 16
  %vm75 = vc.u32 %v67, %v71
  %v76 = vsel %vm75, 1, 0
  %v77 = vadd.s32 %v67, %v71
  %v78 = vadd.s32 %v70, %v76
  %vm79 = vc.u32 %v77, %v73
  %v80 = vsel %vm79, 1, 0
  %v81 = vadd.s32 %v77, %v73
  %v82 = vadd.s32 %v78, %v80
  %v83 = vadd.s32 %v82, %v72
  %v84 = vadd.s32 %v83, %v74
  %v85 = vand.u32 %v62, 65535
  %v86 = vshrl.u32 %v62, 16
  %v87 = vand.u32 %v57, 65535
  %v88 = vshrl.u32 %v57, 16
  %v89 = vmul.u32 %v85, %v87
  %v90 = vmul.u32 %v85, %v88
  %v91 = vmul.u32 %v86, %v87
  %v92 = vmul.u32 %v86, %v88
  %v93 = vshll.u32 %v90, 16
  %v94 = vshrl.u32 %v90, 16
  %v95 = vshll.u32 %v91, 16
  %v96 = vshrl.u32 %v91, 16
  %vm97 = vc.u32 %v89, %v93
  %v98 = vsel %vm97, 1, 0
  %v99 = vadd.s32 %v89, %v93
  %v100 = vadd.s32 %v92, %v98
  %vm101 = vc.u32 %v99, %v95
  %v102 = vsel %vm101, 1, 0
  %v103 = vadd.s32 %v99, %v95
  %v104 = vadd.s32 %v100, %v102
  %v105 = vadd.s32 %v104, %v94
  %v106 = vadd.s32 %v105, %v96
  %v107 = vmul.u32 %v62, %v53
  %v108 = vadd.s32 %v84, %v103
  %vm109 = vc.u32 %v84, %v103
  %v110 = vadd.s32 %v106, 1
  %v111 = vsel %vm109, %v110, %v106
  %v112 = vadd.s32 %v107, %v111
  %v113 = vadd.s32 %v112, 536870912
  %v114 = vshrl.u32 %v113, 30
  %v115 = vshll.u32 %v114, 30
  %v116 = vsub.s32 %v112, %v115
  %vm117 = vcmp.lt.s32.totalorder %v116, 0
  %v118 = vsub.s32 0, %v116
  %v119 = vsel %vm117, %v118, %v116
  %v120 = vclz %v119
  %v121 = vsub.s32 %v120, 2
  %vm122 = vcmp.gt.s32.totalorder 0, %v121
  %v123 = vsel %vm122, 0, %v121
  %v124 = vsub.s32 32, %v123
  %v125 = vshll.u32 %v116, %v123
  %v126 = vshrl.u32 %v108, %v124
  %v127 = vor.u32 %v125, %v126
  %v128 = vsub.s32 4294967266, %v123
  %v129 = vadd.s32 %v128, 127
  %v130 = vshll.u32 %v129, 23
  %v131 = vor.u32 4788187, %v130
  %v132 = vand.u32 2147483647, %v131
  %v134 = vcvt.s32.f32 %v127
  %v135 = vmul.f32 %v134, %v132
  %v136 = vxor.u32 %v135, 2147483648
  %v137 = vsel %vm16, %v136, %v135
  %v138 = vsub.s32 4, %v114
  %v139 = vsel %vm16, %v138, %v114
  %v140 = vsel %vm15, %v10, %v137
  %v141 = vsel %vm15, 0, %v139
  %v142 = vmul.f32 %v140, %v140
  %v143 = vmul.f32 %v142, -0.001358992
  %v144 = vadd.f32 %v143, 0.041655596
  %v145 = vmul.f32 %v142, %v144
  %v146 = vadd.f32 %v145, -0.4999988
  %v147 = vmul.f32 %v142, %v146
  %v148 = vadd.f32 1.0, %v147
  %v149 = vmul.f32 %v140, %v140
  %v150 = vmul.f32 %v149, -0.00019511016
  %v151 = vadd.f32 %v150, 0.008332121
  %v152 = vmul.f32 %v149, %v151
  %v153 = vadd.f32 %v152, -0.16666654
  %v154 = vmul.f32 %v149, %v153
  %v155 = vadd.f32 %v154, 1.0
  %v156 = vmul.f32 %v155, %v140
  %vm157 = vweird.f32 %v10
  %v158 = vadd.s32 %v141, 3
  %v159 = vand.u32 %v158, 3
  %vm160 = vcmp.lt.s32.totalorder %v159, 2
  %vm161 = vcmp.eq.s32.totalorder %v159, 0
  %v162 = vxor.u32 %v156, 2147483648
  %v163 = vsel %vm161, %v148, %v162
  %vm164 = vcmp.eq.s32.totalorder %v159, 2
  %v165 = vxor.u32 %v148, 2147483648
  %v166 = vsel %vm164, %v165, %v156
  %v167 = vsel %vm160, %v163, %v166
  %v168 = vsel %vm157, nan, %v167
  %v169 = vand.u32 2147483647, %v11
  %vm170 = vcmp.le.f32.partialorder %v169, 0.7853982
  %vm171 = vcmp.lt.s32.totalorder %v11, 0
  %v172 = vand.u32 %v11, 2139095040
  %v173 = vshrl.u32 %v172, 23
  %v174 = vsub.s32 %v173, 127
  %v175 = vand.u32 2147483647, %v11
  %v176 = vand.u32 %v175, 8388607
  %v177 = vor.u32 %v176, 8388608
  %v178 = vsub.s32 0, %v177
  %v179 = vadd.s32 %v174, 1
  %vm180 = vcmp.gt.s32.totalorder %v179, 0
  %v181 = vsel %vm180, %v179, 0
  %v182 = vshrl.u32 %v181, 5
  %v183 = vand.u32 %v181, 31
  %v184 = vsub.s32 32, %v183
  %v185 = vshrl.u32 683565275, %v184
  %v186 = vshll.u32 683565275, %v183
  %v187 = vshrl.u32 2475754826, %v184
  %v188 = vor.u32 %v186, %v187
  %v189 = vshll.u32 2475754826, %v183
  %v190 = vshrl.u32 2131351028, %v184
  %v191 = vor.u32 %v189, %v190
  %v192 = vshll.u32 2131351028, %v183
  %v193 = vshrl.u32 2102212464, %v184
  %v194 = vor.u32 %v192, %v193
  %v195 = vshll.u32 2102212464, %v183
  %v196 = vshrl.u32 920167782, %v184
  %v197 = vor.u32 %v195, %v196
  %v198 = vshll.u32 920167782, %v183
  %v199 = vshrl.u32 1326507024, %v184
  %v200 = vor.u32 %v198, %v199
  %vm201 = vcmp.lt.s32.totalorder %v182, 1
  %vm202 = vcmp.lt.s32.totalorder %v182, 2
  %vm203 = vcmp.lt.s32.totalorder %v182, 3
  %vm204 = vcmp.lt.s32.totalorder %v182, 4
  %v205 = vsel %vm201, %v185, %v188
  %v206 = vsel %vm204, %v194, 2102212464
  %v207 = vsel %vm203, %v191, %v206
  %v208 = vsel %vm202, %v205, %v207
  %v209 = vsel %vm201, %v188, %v191
  %v210 = vsel %vm204, %v197, 920167782
  %v211 = vsel %vm203, %v194, %v210
  %v212 = vsel %vm202, %v209, %v211
  %v213 = vsel %vm201, %v191, %v194
  %v214 = vsel %vm204, %v200, 1326507024
  %v215 = vsel %vm203, %v197, %v214
  %v216 = vsel %vm202, %v213, %v215
  %v217 = vshll.u32 %v177, 8
  %v218 = vand.u32 %v217, 65535
  %v219 = vshrl.u32 %v217, 16
  %v220 = vand.u32 %v216, 65535
  %v221 = vshrl.u32 %v216, 16
  %v222 = vmul.u32 %v218, %v220
  %v223 = vmul.u32 %v218, %v221
  %v224 = vmul.u32 %v219, %v220
  %v225 = vmul.u32 %v219, %v221
  %v226 = vshll.u32 %v223, 16
  %v227 = vshrl.u32 %v223, 16
  %v228 = vshll.u32 %v224, 16
  %v229 = vshrl.u32 %v224, 16
  %vm230 = vc.u32 %v222, %v226
  %v231 = vsel %vm230, 1, 0
  %v232 = vadd.s32 %v222, %v226
  %v233 = vadd.s32 %v225, %v231
  %vm234 = vc.u32 %v232, %v228
  %v235 = vsel %vm234, 1, 0
  %v236 = vadd.s32 %v232, %v228
  %v237 = vadd.s32 %v233, %v235
  %v238 = vadd.s32 %v237, %v227
  %v239 = vadd.s32 %v238, %v229
  %v240 = vand.u32 %v217, 65535
  %v241 = vshrl.u32 %v217, 16
  %v242 = vand.u32 %v212, 65535
  %v243 = vshrl.u32 %v212, 16
  %v244 = vmul.u32 %v240, %v242
  %v245 = vmul.u32 %v240, %v243
  %v246 = vmul.u32 %v241, %v242
  %v247 = vmul.u32 %v241, %v243
  %v248 = vshll.u32 %v245, 16
  %v249 = vshrl.u32 %v245, 16
  %v250 = vshll.u32 %v246, 16
  %v251 = vshrl.u32 %v246, 16
  %vm252 = vc.u32 %v244, %v248
  %v253 = vsel %vm252, 1, 0
  %v254 = vadd.s32 %v244, %v248
  %v255 = vadd.s32 %v247, %v253
  %vm256 = vc.u32 %v254, %v250
  %v257 = vsel %vm256, 1, 0
  %v258 = vadd.s32 %v254, %v250
  %v259 = vadd.s32 %v255, %v257
  %v260 = vadd.s32 %v259, %v249
  %v261 = vadd.s32 %v260, %v251
  %v262 = vmul.u32 %v217, %v208
  %v263 = vadd.s32 %v239, %v258
  %vm264 = vc.u32 %v239, %v258
  %v265 = vadd.s32 %v261, 1
  %v266 = vsel %vm264, %v265, %v261
  %v267 = vadd.s32 %v262, %v266
  %v268 = vadd.s32 %v267, 536870912
  %v269 = vshrl.u32 %v268, 30
  %v270 = vshll.u32 %v269, 30
  %v271 = vsub.s32 %v267, %v270
  %vm272 = vcmp.lt.s32.totalorder %v271, 0
  %v273 = vsub.s32 0, %v271
  %v274 = vsel %vm272, %v273, %v271
  %v275 = vclz %v274
  %v276 = vsub.s32 %v275, 2
  %vm277 = vcmp.gt.s32.totalorder 0, %v276
  %v278 = vsel %vm277, 0, %v276
  %v279 = vsub.s32 32, %v278
  %v280 = vshll.u32 %v271, %v278
  %v281 = vshrl.u32 %v263, %v279
  %v282 = vor.u32 %v280, %v281
  %v283 = vsub.s32 4294967266, %v278
  %v284 = vadd.s32 %v283, 127
  %v285 = vshll.u32 %v284, 23
  %v286 = vor.u32 4788187, %v285
  %v287 = vand.u32 2147483647, %v286
  %v289 = vcvt.s32.f32 %v282
  %v290 = vmul.f32 %v289, %v287
  %v291 = vxor.u32 %v290, 2147483648
  %v292 = vsel %vm171, %v291, %v290
  %v293 = vsub.s32 4, %v269
  %v294 = vsel %vm171, %v293, %v269
  %v295 = vsel %vm170, %v11, %v292
  %v296 = vsel %vm170, 0, %v294
  %v297 = vmul.f32 %v295, %v295
  %v298 = vmul.f32 %v297, -0.001358992
  %v299 = vadd.f32 %v298, 0.041655596
  %v300 = vmul.f32 %v297, %v299
  %v301 = vadd.f32 %v300, -0.4999988
  %v302 = vmul.f32 %v297, %v301
  %v303 = vadd.f32 1.0, %v302
  %v304 = vmul.f32 %v295, %v295
  %v305 = vmul.f32 %v304, -0.00019511016
  %v306 = vadd.f32 %v305, 0.008332121
  %v307 = vmul.f32 %v304, %v306
  %v308 = vadd.f32 %v307, -0.16666654
  %v309 = vmul.f32 %v304, %v308
  %v310 = vadd.f32 %v309, 1.0
  %v311 = vmul.f32 %v310, %v295
  %vm312 = vweird.f32 %v11
  %v313 = vadd.s32 %v296, 3
  %v314 = vand.u32 %v313, 3
  %vm315 = vcmp.lt.s32.totalorder %v314, 2
  %vm316 = vcmp.eq.s32.totalorder %v314, 0
  %v317 = vxor.u32 %v311, 2147483648
  %v318 = vsel %vm316, %v303, %v317
  %vm319 = vcmp.eq.s32.totalorder %v314, 2
  %v320 = vxor.u32 %v303, 2147483648
  %v321 = vsel %vm319, %v320, %v311
  %v322 = vsel %vm315, %v318, %v321
  %v323 = vsel %vm312, nan, %v322
  %v324 = vand.u32 2147483647, %v12
  %vm325 = vcmp.le.f32.partialorder %v324, 0.7853982
  %vm326 = vcmp.lt.s32.totalorder %v12, 0
  %v327 = vand.u32 %v12, 2139095040
  %v328 = vshrl.u32 %v327, 23
  %v329 = vsub.s32 %v328, 127
  %v330 = vand.u32 2147483647, %v12
  %v331 = vand.u32 %v330, 8388607
  %v332 = vor.u32 %v331, 8388608
  %v333 = vsub.s32 0, %v332
  %v334 = vadd.s32 %v329, 1
  %vm335 = vcmp.gt.s32.totalorder %v334, 0
  %v336 = vsel %vm335, %v334, 0
  %v337 = vshrl.u32 %v336, 5
  %v338 = vand.u32 %v336, 31
  %v339 = vsub.s32 32, %v338
  %v340 = vshrl.u32 683565275, %v339
  %v341 = vshll.u32 683565275, %v338
  %v342 = vshrl.u32 2475754826, %v339
  %v343 = vor.u32 %v341, %v342
  %v344 = vshll.u32 2475754826, %v338
  %v345 = vshrl.u32 2131351028, %v339
  %v346 = vor.u32 %v344, %v345
  %v347 = vshll.u32 2131351028, %v338
  %v348 = vshrl.u32 2102212464, %v339
  %v349 = vor.u32 %v347, %v348
  %v350 = vshll.u32 2102212464, %v338
  %v351 = vshrl.u32 920167782, %v339
  %v352 = vor.u32 %v350, %v351
  %v353 = vshll.u32 920167782, %v338
  %v354 = vshrl.u32 1326507024, %v339
  %v355 = vor.u32 %v353, %v354
  %vm356 = vcmp.lt.s32.totalorder %v337, 1
  %vm357 = vcmp.lt.s32.totalorder %v337, 2
  %vm358 = vcmp.lt.s32.totalorder %v337, 3
  %vm359 = vcmp.lt.s32.totalorder %v337, 4
  %v360 = vsel %vm356, %v340, %v343
  %v361 = vsel %vm359, %v349, 2102212464
  %v362 = vsel %vm358, %v346, %v361
  %v363 = vsel %vm357, %v360, %v362
  %v364 = vsel %vm356, %v343, %v346
  %v365 = vsel %vm359, %v352, 920167782
  %v366 = vsel %vm358, %v349, %v365
  %v367 = vsel %vm357, %v364, %v366
  %v368 = vsel %vm356, %v346, %v349
  %v369 = vsel %vm359, %v355, 1326507024
  %v370 = vsel %vm358, %v352, %v369
  %v371 = vsel %vm357, %v368, %v370
  %v372 = vshll.u32 %v332, 8
  %v373 = vand.u32 %v372, 65535
  %v374 = vshrl.u32 %v372, 16
  %v375 = vand.u32 %v371, 65535
  %v376 = vshrl.u32 %v371, 16
  %v377 = vmul.u32 %v373, %v375
  %v378 = vmul.u32 %v373, %v376
  %v379 = vmul.u32 %v374, %v375
  %v380 = vmul.u32 %v374, %v376
  %v381 = vshll.u32 %v378, 16
  %v382 = vshrl.u32 %v378, 16
  %v383 = vshll.u32 %v379, 16
  %v384 = vshrl.u32 %v379, 16
  %vm385 = vc.u32 %v377, %v381
  %v386 = vsel %vm385, 1, 0
  %v387 = vadd.s32 %v377, %v381
  %v388 = vadd.s32 %v380, %v386
  %vm389 = vc.u32 %v387, %v383
  %v390 = vsel %vm389, 1, 0
  %v391 = vadd.s32 %v387, %v383
  %v392 = vadd.s32 %v388, %v390
  %v393 = vadd.s32 %v392, %v382
  %v394 = vadd.s32 %v393, %v384
  %v395 = vand.u32 %v372, 65535
  %v396 = vshrl.u32 %v372, 16
  %v397 = vand.u32 %v367, 65535
  %v398 = vshrl.u32 %v367, 16
  %v399 = vmul.u32 %v395, %v397
  %v400 = vmul.u32 %v395, %v398
  %v401 = vmul.u32 %v396, %v397
  %v402 = vmul.u32 %v396, %v398
  %v403 = vshll.u32 %v400, 16
  %v404 = vshrl.u32 %v400, 16
  %v405 = vshll.u32 %v401, 16
  %v406 = vshrl.u32 %v401, 16
  %vm407 = vc.u32 %v399, %v403
  %v408 = vsel %vm407, 1, 0
  %v409 = vadd.s32 %v399, %v403
  %v410 = vadd.s32 %v402, %v408
  %vm411 = vc.u32 %v409, %v405
  %v412 = vsel %vm411, 1, 0
  %v413 = vadd.s32 %v409, %v405
  %v414 = vadd.s32 %v410, %v412
  %v415 = vadd.s32 %v414, %v404
  %v416 = vadd.s32 %v415, %v406
  %v417 = vmul.u32 %v372, %v363
  %v418 = vadd.s32 %v394, %v413
  %vm419 = vc.u32 %v394, %v413
  %v420 = vadd.s32 %v416, 1
  %v421 = vsel %vm419, %v420, %v416
  %v422 = vadd.s32 %v417, %v421
  %v423 = vadd.s32 %v422, 536870912
  %v424 = vshrl.u32 %v423, 30
  %v425 = vshll.u32 %v424, 30
  %v426 = vsub.s32 %v422, %v425
  %vm427 = vcmp.lt.s32.totalorder %v426, 0
  %v428 = vsub.s32 0, %v426
  %v429 = vsel %vm427, %v428, %v426
  %v430 = vclz %v429
  %v431 = vsub.s32 %v430, 2
  %vm432 = vcmp.gt.s32.totalorder 0, %v431
  %v433 = vsel %vm432, 0, %v431
  %v434 = vsub.s32 32, %v433
  %v435 = vshll.u32 %v426, %v433
  %v436 = vshrl.u32 %v418, %v434
  %v437 = vor.u32 %v435, %v436
  %v438 = vsub.s32 4294967266, %v433
  %v439 = vadd.s32 %v438, 127
  %v440 = vshll.u32 %v439, 23
  %v441 = vor.u32 4788187, %v440
  %v442 = vand.u32 2147483647, %v441
  %v444 = vcvt.s32.f32 %v437
  %v445 = vmul.f32 %v444, %v442
  %v446 = vxor.u32 %v445, 2147483648
  %v447 = vsel %vm326, %v446, %v445
  %v448 = vsub.s32 4, %v424
  %v449 = vsel %vm326, %v448, %v424
  %v450 = vsel %vm325, %v12, %v447
  %v451 = vsel %vm325, 0, %v449
  %v452 = vmul.f32 %v450, %v450
  %v453 = vmul.f32 %v452, -0.001358992
  %v454 = vadd.f32 %v453, 0.041655596
  %v455 = vmul.f32 %v452, %v454
  %v456 = vadd.f32 %v455, -0.4999988
  %v457 = vmul.f32 %v452, %v456
  %v458 = vadd.f32 1.0, %v457
  %v459 = vmul.f32 %v450, %v450
  %v460 = vmul.f32 %v459, -0.00019511016
  %v461 = vadd.f32 %v460, 0.008332121
  %v462 = vmul.f32 %v459, %v461
  %v463 = vadd.f32 %v462, -0.16666654
  %v464 = vmul.f32 %v459, %v463
  %v465 = vadd.f32 %v464, 1.0
  %v466 = vmul.f32 %v465, %v450
  %vm467 = vweird.f32 %v12
  %v468 = vadd.s32 %v451, 3
  %v469 = vand.u32 %v468, 3
  %vm470 = vcmp.lt.s32.totalorder %v469, 2
  %vm471 = vcmp.eq.s32.totalorder %v469, 0
  %v472 = vxor.u32 %v466, 2147483648
  %v473 = vsel %vm471, %v458, %v472
  %vm474 = vcmp.eq.s32.totalorder %v469, 2
  %v475 = vxor.u32 %v458, 2147483648
  %v476 = vsel %vm474, %v475, %v466
  %v477 = vsel %vm470, %v473, %v476
  %v478 = vsel %vm467, nan, %v477
  %v479 = vand.u32 2147483647, %v13
  %vm480 = vcmp.le.f32.partialorder %v479, 0.7853982
  %vm481 = vcmp.lt.s32.totalorder %v13, 0
  %v482 = vand.u32 %v13, 2139095040
  %v483 = vshrl.u32 %v482, 23
  %v484 = vsub.s32 %v483, 127
  %v485 = vand.u32 2147483647, %v13
  %v486 = vand.u32 %v485, 8388607
  %v487 = vor.u32 %v486, 8388608
  %v488 = vsub.s32 0, %v487
  %v489 = vadd.s32 %v484, 1
  %vm490 = vcmp.gt.s32.totalorder %v489, 0
  %v491 = vsel %vm490, %v489, 0
  %v492 = vshrl.u32 %v491, 5
  %v493 = vand.u32 %v491, 31
  %v494 = vsub.s32 32, %v493
  %v495 = vshrl.u32 683565275, %v494
  %v496 = vshll.u32 683565275, %v493
  %v497 = vshrl.u32 2475754826, %v494
  %v498 = vor.u32 %v496, %v497
  %v499 = vshll.u32 2475754826, %v493
  %v500 = vshrl.u32 2131351028, %v494
  %v501 = vor.u32 %v499, %v500
  %v502 = vshll.u32 2131351028, %v493
  %v503 = vshrl.u32 2102212464, %v494
  %v504 = vor.u32 %v502, %v503
  %v505 = vshll.u32 2102212464, %v493
  %v506 = vshrl.u32 920167782, %v494
  %v507 = vor.u32 %v505, %v506
  %v508 = vshll.u32 920167782, %v493
  %v509 = vshrl.u32 1326507024, %v494
  %v510 = vor.u32 %v508, %v509
  %vm511 = vcmp.lt.s32.totalorder %v492, 1
  %vm512 = vcmp.lt.s32.totalorder %v492, 2
  %vm513 = vcmp.lt.s32.totalorder %v492, 3
  %vm514 = vcmp.lt.s32.totalorder %v492, 4
  %v515 = vsel %vm511, %v495, %v498
  %v516 = vsel %vm514, %v504, 2102212464
  %v517 = vsel %vm513, %v501, %v516
  %v518 = vsel %vm512, %v515, %v517
  %v519 = vsel %vm511, %v498, %v501
  %v520 = vsel %vm514, %v507, 920167782
  %v521 = vsel %vm513, %v504, %v520
  %v522 = vsel %vm512, %v519, %v521
  %v523 = vsel %vm511, %v501, %v504
  %v524 = vsel %vm514, %v510, 1326507024
  %v525 = vsel %vm513, %v507, %v524
  %v526 = vsel %vm512, %v523, %v525
  %v527 = vshll.u32 %v487, 8
  %v528 = vand.u32 %v527, 65535
  %v529 = vshrl.u32 %v527, 16
  %v530 = vand.u32 %v526, 65535
  %v531 = vshrl.u32 %v526, 16
  %v532 = vmul.u32 %v528, %v530
  %v533 = vmul.u32 %v528, %v531
  %v534 = vmul.u32 %v529, %v530
  %v535 = vmul.u32 %v529, %v531
  %v536 = vshll.u32 %v533, 16
  %v537 = vshrl.u32 %v533, 16
  %v538 = vshll.u32 %v534, 16
  %v539 = vshrl.u32 %v534, 16
  %vm540 = vc.u32 %v532, %v536
  %v541 = vsel %vm540, 1, 0
  %v542 = vadd.s32 %v532, %v536
  %v543 = vadd.s32 %v535, %v541
  %vm544 = vc.u32 %v542, %v538
  %v545 = vsel %vm544, 1, 0
  %v546 = vadd.s32 %v542, %v538
  %v547 = vadd.s32 %v543, %v545
  %v548 = vadd.s32 %v547, %v537
  %v549 = vadd.s32 %v548, %v539
  %v550 = vand.u32 %v527, 65535
  %v551 = vshrl.u32 %v527, 16
  %v552 = vand.u32 %v522, 65535
  %v553 = vshrl.u32 %v522, 16
  %v554 = vmul.u32 %v550, %v552
  %v555 = vmul.u32 %v550, %v553
  %v556 = vmul.u32 %v551, %v552
  %v557 = vmul.u32 %v551, %v553
  %v558 = vshll.u32 %v555, 16
  %v559 = vshrl.u32 %v555, 16
  %v560 = vshll.u32 %v556, 16
  %v561 = vshrl.u32 %v556, 16
  %vm562 = vc.u32 %v554, %v558
  %v563 = vsel %vm562, 1, 0
  %v564 = vadd.s32 %v554, %v558
  %v565 = vadd.s32 %v557, %v563
  %vm566 = vc.u32 %v564, %v560
  %v567 = vsel %vm566, 1, 0
  %v568 = vadd.s32 %v564, %v560
  %v569 = vadd.s32 %v565, %v567
  %v570 = vadd.s32 %v569, %v559
  %v571 = vadd.s32 %v570, %v561
  %v572 = vmul.u32 %v527, %v518
  %v573 = vadd.s32 %v549, %v568
  %vm574 = vc.u32 %v549, %v568
  %v575 = vadd.s32 %v571, 1
  %v576 = vsel %vm574, %v575, %v571
  %v577 = vadd.s32 %v572, %v576
  %v578 = vadd.s32 %v577, 536870912
  %v579 = vshrl.u32 %v578, 30
  %v580 = vshll.u32 %v579, 30
  %v581 = vsub.s32 %v577, %v580
  %vm582 = vcmp.lt.s32.totalorder %v581, 0
  %v583 = vsub.s32 0, %v581
  %v584 = vsel %vm582, %v583, %v581
  %v585 = vclz %v584
  %v586 = vsub.s32 %v585, 2
  %vm587 = vcmp.gt.s32.totalorder 0, %v586
  %v588 = vsel %vm587, 0, %v586
  %v589 = vsub.s32 32, %v588
  %v590 = vshll.u32 %v581, %v588
  %v591 = vshrl.u32 %v573, %v589
  %v592 = vor.u32 %v590, %v591
  %v593 = vsub.s32 4294967266, %v588
  %v594 = vadd.s32 %v593, 127
  %v595 = vshll.u32 %v594, 23
  %v596 = vor.u32 4788187, %v595
  %v597 = vand.u32 2147483647, %v596
  %v599 = vcvt.s32.f32 %v592
  %v600 = vmul.f32 %v599, %v597
  %v601 = vxor.u32 %v600, 2147483648
  %v602 = vsel %vm481, %v601, %v600
  %v603 = vsub.s32 4, %v579
  %v604 = vsel %vm481, %v603, %v579
  %v605 = vsel %vm480, %v13, %v602
  %v606 = vsel %vm480, 0, %v604
  %v607 = vmul.f32 %v605, %v605
  %v608 = vmul.f32 %v607, -0.001358992
  %v609 = vadd.f32 %v608, 0.041655596
  %v610 = vmul.f32 %v607, %v609
  %v611 = vadd.f32 %v610, -0.4999988
  %v612 = vmul.f32 %v607, %v611
  %v613 = vadd.f32 1.0, %v612
  %v614 = vmul.f32 %v605, %v605
  %v615 = vmul.f32 %v614, -0.00019511016
  %v616 = vadd.f32 %v615, 0.008332121
  %v617 = vmul.f32 %v614, %v616
  %v618 = vadd.f32 %v617, -0.16666654
  %v619 = vmul.f32 %v614, %v618
  %v620 = vadd.f32 %v619, 1.0
  %v621 = vmul.f32 %v620, %v605
  %vm622 = vweird.f32 %v13
  %v623 = vadd.s32 %v606, 3
  %v624 = vand.u32 %v623, 3
  %vm625 = vcmp.lt.s32.totalorder %v624, 2
  %vm626 = vcmp.eq.s32.totalorder %v624, 0
  %v627 = vxor.u32 %v621, 2147483648
  %v628 = vsel %vm626, %v613, %v627
  %vm629 = vcmp.eq.s32.totalorder %v624, 2
  %v630 = vxor.u32 %v613, 2147483648
  %v631 = vsel %vm629, %v630, %v621
  %v632 = vsel %vm625, %v628, %v631
  %v633 = vsel %vm622, nan, %v632
  %v634 = vand.u32 2147483647, %v10
  %vm635 = vcmp.le.f32.partialorder %v634, 0.7853982
  %vm636 = vcmp.lt.s32.totalorder %v10, 0
  %v637 = vand.u32 %v10, 2139095040
  %v638 = vshrl.u32 %v637, 23
  %v639 = vsub.s32 %v638, 127
  %v640 = vand.u32 2147483647, %v10
  %v641 = vand.u32 %v640, 8388607
  %v642 = vor.u32 %v641, 8388608
  %v643 = vsub.s32 0, %v642
  %v644 = vadd.s32 %v639, 1
  %vm645 = vcmp.gt.s32.totalorder %v644, 0
  %v646 = vsel %vm645, %v644, 0
  %v647 = vshrl.u32 %v646, 5
  %v648 = vand.u32 %v646, 31
  %v649 = vsub.s32 32, %v648
  %v650 = vshrl.u32 683565275, %v649
  %v651 = vshll.u32 683565275, %v648
  %v652 = vshrl.u32 2475754826, %v649
  %v653 = vor.u32 %v651, %v652
  %v654 = vshll.u32 2475754826, %v648
  %v655 = vshrl.u32 2131351028, %v649
  %v656 = vor.u32 %v654, %v655
  %v657 = vshll.u32 2131351028, %v648
  %v658 = vshrl.u32 2102212464, %v649
  %v659 = vor.u32 %v657, %v658
  %v660 = vshll.u32 2102212464, %v648
  %v661 = vshrl.u32 920167782, %v649
  %v662 = vor.u32 %v660, %v661
  %v663 = vshll.u32 920167782, %v648
  %v664 = vshrl.u32 1326507024, %v649
  %v665 = vor.u32 %v663, %v664
  %vm666 = vcmp.lt.s32.totalorder %v647, 1
  %vm667 = vcmp.lt.s32.totalorder %v647, 2
  %vm668 = vcmp.lt.s32.totalorder %v647, 3
  %vm669 = vcmp.lt.s32.totalorder %v647, 4
  %v670 = vsel %vm666, %v650, %v653
  %v671 = vsel %vm669, %v659, 2102212464
  %v672 = vsel %vm668, %v656, %v671
  %v673 = vsel %vm667, %v670, %v672
  %v674 = vsel %vm666, %v653, %v656
  %v675 = vsel %vm669, %v662, 920167782
  %v676 = vsel %vm668, %v659, %v675
  %v677 = vsel %vm667, %v674, %v676
  %v678 = vsel %vm666, %v656, %v659
  %v679 = vsel %vm669, %v665, 1326507024
  %v680 = vsel %vm668, %v662, %v679
  %v681 = vsel %vm667, %v678, %v680
  %v682 = vshll.u32 %v642, 8
  %v683 = vand.u32 %v682, 65535
  %v684 = vshrl.u32 %v682, 16
  %v685 = vand.u32 %v681, 65535
  %v686 = vshrl.u32 %v681, 16
  %v687 = vmul.u32 %v683, %v685
  %v688 = vmul.u32 %v683, %v686
  %v689 = vmul.u32 %v684, %v685
  %v690 = vmul.u32 %v684, %v686
  %v691 = vshll.u32 %v688, 16
  %v692 = vshrl.u32 %v688, 16
  %v693 = vshll.u32 %v689, 16
  %v694 = vshrl.u32 %v689, 16
  %vm695 = vc.u32 %v687, %v691
  %v696 = vsel %vm695, 1, 0
  %v697 = vadd.s32 %v687, %v691
  %v698 = vadd.s32 %v690, %v696
  %vm699 = vc.u32 %v697, %v693
  %v700 = vsel %vm699, 1, 0
  %v701 = vadd.s32 %v697, %v693
  %v702 = vadd.s32 %v698, %v700
  %v703 = vadd.s32 %v702, %v692
  %v704 = vadd.s32 %v703, %v694
  %v705 = vand.u32 %v682, 65535
  %v706 = vshrl.u32 %v682, 16
  %v707 = vand.u32 %v677, 65535
  %v708 = vshrl.u32 %v677, 16
  %v709 = vmul.u32 %v705, %v707
  %v710 = vmul.u32 %v705, %v708
  %v711 = vmul.u32 %v706, %v707
  %v712 = vmul.u32 %v706, %v708
  %v713 = vshll.u32 %v710, 16
  %v714 = vshrl.u32 %v710, 16
  %v715 = vshll.u32 %v711, 16
  %v716 = vshrl.u32 %v711, 16
  %vm717 = vc.u32 %v709, %v713
  %v718 = vsel %vm717, 1, 0
  %v719 = vadd.s32 %v709, %v713
  %v720 = vadd.s32 %v712, %v718
  %vm721 = vc.u32 %v719, %v715
  %v722 = vsel %vm721, 1, 0
  %v723 = vadd.s32 %v719, %v715
  %v724 = vadd.s32 %v720, %v722
  %v725 = vadd.s32 %v724, %v714
  %v726 = vadd.s32 %v725, %v716
  %v727 = vmul.u32 %v682, %v673
  %v728 = vadd.s32 %v704, %v723
  %vm729 = vc.u32 %v704, %v723
  %v730 = vadd.s32 %v726, 1
  %v731 = vsel %vm729, %v730, %v726
  %v732 = vadd.s32 %v727, %v731
  %v733 = vadd.s32 %v732, 536870912
  %v734 = vshrl.u32 %v733, 30
  %v735 = vshll.u32 %v734, 30
  %v736 = vsub.s32 %v732, %v735
  %vm737 = vcmp.lt.s32.totalorder %v736, 0
  %v738 = vsub.s32 0, %v736
  %v739 = vsel %vm737, %v738, %v736
  %v740 = vclz %v739
  %v741 = vsub.s32 %v740, 2
  %vm742 = vcmp.gt.s32.totalorder 0, %v741
  %v743 = vsel %vm742, 0, %v741
  %v744 = vsub.s32 32, %v743
  %v745 = vshll.u32 %v736, %v743
  %v746 = vshrl.u32 %v728, %v744
  %v747 = vor.u32 %v745, %v746
  %v748 = vsub.s32 4294967266, %v743
  %v749 = vadd.s32 %v748, 127
  %v750 = vshll.u32 %v749, 23
  %v751 = vor.u32 4788187, %v750
  %v752 = vand.u32 2147483647, %v751
  %v754 = vcvt.s32.f32 %v747
  %v755 = vmul.f32 %v754, %v752
  %v756 = vxor.u32 %v755, 2147483648
  %v757 = vsel %vm636, %v756, %v755
  %v758 = vsub.s32 4, %v734
  %v759 = vsel %vm636, %v758, %v734
  %v760 = vsel %vm635, %v10, %v757
  %v761 = vsel %vm635, 0, %v759
  %v762 = vmul.f32 %v760, %v760
  %v763 = vmul.f32 %v762, -0.001358992
  %v764 = vadd.f32 %v763, 0.041655596
  %v765 = vmul.f32 %v762, %v764
  %v766 = vadd.f32 %v765, -0.4999988
  %v767 = vmul.f32 %v762, %v766
  %v768 = vadd.f32 1.0, %v767
  %v769 = vmul.f32 %v760, %v760
  %v770 = vmul.f32 %v769, -0.00019511016
  %v771 = vadd.f32 %v770, 0.008332121
  %v772 = vmul.f32 %v769, %v771
  %v773 = vadd.f32 %v772, -0.16666654
  %v774 = vmul.f32 %v769, %v773
  %v775 = vadd.f32 %v774, 1.0
  %v776 = vmul.f32 %v775, %v760
  %vm777 = vweird.f32 %v10
  %v778 = vand.u32 %v761, 3
  %vm779 = vcmp.lt.s32.totalorder %v778, 2
  %vm780 = vcmp.eq.s32.totalorder %v778, 0
  %v781 = vxor.u32 %v776, 2147483648
  %v782 = vsel %vm780, %v768, %v781
  %vm783 = vcmp.eq.s32.totalorder %v778, 2
  %v784 = vxor.u32 %v768, 2147483648
  %v785 = vsel %vm783, %v784, %v776
  %v786 = vsel %vm779, %v782, %v785
  %v787 = vsel %vm777, nan, %v786
  %v788 = vand.u32 2147483647, %v11
  %vm789 = vcmp.le.f32.partialorder %v788, 0.7853982
  %vm790 = vcmp.lt.s32.totalorder %v11, 0
  %v791 = vand.u32 %v11, 2139095040
  %v792 = vshrl.u32 %v791, 23
  %v793 = vsub.s32 %v792, 127
  %v794 = vand.u32 2147483647, %v11
  %v795 = vand.u32 %v794, 8388607
  %v796 = vor.u32 %v795, 8388608
  %v797 = vsub.s32 0, %v796
  %v798 = vadd.s32 %v793, 1
  %vm799 = vcmp.gt.s32.totalorder %v798, 0
  %v800 = vsel %vm799, %v798, 0
  %v801 = vshrl.u32 %v800, 5
  %v802 = vand.u32 %v800, 31
  %v803 = vsub.s32 32, %v802
  %v804 = vshrl.u32 683565275, %v803
  %v805 = vshll.u32 683565275, %v802
  %v806 = vshrl.u32 2475754826, %v803
  %v807 = vor.u32 %v805, %v806
  %v808 = vshll.u32 2475754826, %v802
  %v809 = vshrl.u32 2131351028, %v803
  %v810 = vor.u32 %v808, %v809
  %v811 = vshll.u32 2131351028, %v802
  %v812 = vshrl.u32 2102212464, %v803
  %v813 = vor.u32 %v811, %v812
  %v814 = vshll.u32 2102212464, %v802
  %v815 = vshrl.u32 920167782, %v803
  %v816 = vor.u32 %v814, %v815
  %v817 = vshll.u32 920167782, %v802
  %v818 = vshrl.u32 1326507024, %v803
  %v819 = vor.u32 %v817, %v818
  %vm820 = vcmp.lt.s32.totalorder %v801, 1
  %vm821 = vcmp.lt.s32.totalorder %v801, 2
  %vm822 = vcmp.lt.s32.totalorder %v801, 3
  %vm823 = vcmp.lt.s32.totalorder %v801, 4
  %v824 = vsel %vm820, %v804, %v807
  %v825 = vsel %vm823, %v813, 2102212464
  %v826 = vsel %vm822, %v810, %v825
  %v827 = vsel %vm821, %v824, %v826
  %v828 = vsel %vm820, %v807, %v810
  %v829 = vsel %vm823, %v816, 920167782
  %v830 = vsel %vm822, %v813, %v829
  %v831 = vsel %vm821, %v828, %v830
  %v832 = vsel %vm820, %v810, %v813
  %v833 = vsel %vm823, %v819, 1326507024
  %v834 = vsel %vm822, %v816, %v833
  %v835 = vsel %vm821, %v832, %v834
  %v836 = vshll.u32 %v796, 8
  %v837 = vand.u32 %v836, 65535
  %v838 = vshrl.u32 %v836, 16
  %v839 = vand.u32 %v835, 65535
  %v840 = vshrl.u32 %v835, 16
  %v841 = vmul.u32 %v837, %v839
  %v842 = vmul.u32 %v837, %v840
  %v843 = vmul.u32 %v838, %v839
  %v844 = vmul.u32 %v838, %v840
  %v845 = vshll.u32 %v842, 16
  %v846 = vshrl.u32 %v842, 16
  %v847 = vshll.u32 %v843, 16
  %v848 = vshrl.u32 %v843, 16
  %vm849 = vc.u32 %v841, %v845
  %v850 = vsel %vm849, 1, 0
  %v851 = vadd.s32 %v841, %v845
  %v852 = vadd.s32 %v844, %v850
  %vm853 = vc.u32 %v851, %v847
  %v854 = vsel %vm853, 1, 0
  %v855 = vadd.s32 %v851, %v847
  %v856 = vadd.s32 %v852, %v854
  %v857 = vadd.s32 %v856, %v846
  %v858 = vadd.s32 %v857, %v848
  %v859 = vand.u32 %v836, 65535
  %v860 = vshrl.u32 %v836, 16
  %v861 = vand.u32 %v831, 65535
  %v862 = vshrl.u32 %v831, 16
  %v863 = vmul.u32 %v859, %v861
  %v864 = vmul.u32 %v859, %v862
  %v865 = vmul.u32 %v860, %v861
  %v866 = vmul.u32 %v860, %v862
  %v867 = vshll.u32 %v864, 16
  %v868 = vshrl.u32 %v864, 16
  %v869 = vshll.u32 %v865, 16
  %v870 = vshrl.u32 %v865, 16
  %vm871 = vc.u32 %v863, %v867
  %v872 = vsel %vm871, 1, 0
  %v873 = vadd.s32 %v863, %v867
  %v874 = vadd.s32 %v866, %v872
  %vm875 = vc.u32 %v873, %v869
  %v876 = vsel %vm875, 1, 0
  %v877 = vadd.s32 %v873, %v869
  %v878 = vadd.s32 %v874, %v876
  %v879 = vadd.s32 %v878, %v868
  %v880 = vadd.s32 %v879, %v870
  %v881 = vmul.u32 %v836, %v827
  %v882 = vadd.s32 %v858, %v877
  %vm883 = vc.u32 %v858, %v877
  %v884 = vadd.s32 %v880, 1
  %v885 = vsel %vm883, %v884, %v880
  %v886 = vadd.s32 %v881, %v885
  %v887 = vadd.s32 %v886, 536870912
  %v888 = vshrl.u32 %v887, 30
  %v889 = vshll.u32 %v888, 30
  %v890 = vsub.s32 %v886, %v889
  %vm891 = vcmp.lt.s32.totalorder %v890, 0
  %v892 = vsub.s32 0, %v890
  %v893 = vsel %vm891, %v892, %v890
  %v894 = vclz %v893
  %v895 = vsub.s32 %v894, 2
  %vm896 = vcmp.gt.s32.totalorder 0, %v895
  %v897 = vsel %vm896, 0, %v895
  %v898 = vsub.s32 32, %v897
  %v899 = vshll.u32 %v890, %v897
  %v900 = vshrl.u32 %v882, %v898
  %v901 = vor.u32 %v899, %v900
  %v902 = vsub.s32 4294967266, %v897
  %v903 = vadd.s32 %v902, 127
  %v904 = vshll.u32 %v903, 23
  %v905 = vor.u32 4788187, %v904
  %v906 = vand.u32 2147483647, %v905
  %v908 = vcvt.s32.f32 %v901
  %v909 = vmul.f32 %v908, %v906
  %v910 = vxor.u32 %v909, 2147483648
  %v911 = vsel %vm790, %v910, %v909
  %v912 = vsub.s32 4, %v888
  %v913 = vsel %vm790, %v912, %v888
  %v914 = vsel %vm789, %v11, %v911
  %v915 = vsel %vm789, 0, %v913
  %v916 = vmul.f32 %v914, %v914
  %v917 = vmul.f32 %v916, -0.001358992
  %v918 = vadd.f32 %v917, 0.041655596
  %v919 = vmul.f32 %v916, %v918
  %v920 = vadd.f32 %v919, -0.4999988
  %v921 = vmul.f32 %v916, %v920
  %v922 = vadd.f32 1.0, %v921
  %v923 = vmul.f32 %v914, %v914
  %v924 = vmul.f32 %v923, -0.00019511016
  %v925 = vadd.f32 %v924, 0.008332121
  %v926 = vmul.f32 %v923, %v925
  %v927 = vadd.f32 %v926, -0.16666654
  %v928 = vmul.f32 %v923, %v927
  %v929 = vadd.f32 %v928, 1.0
  %v930 = vmul.f32 %v929, %v914
  %vm931 = vweird.f32 %v11
  %v932 = vand.u32 %v915, 3
  %vm933 = vcmp.lt.s32.totalorder %v932, 2
  %vm934 = vcmp.eq.s32.totalorder %v932, 0
  %v935 = vxor.u32 %v930, 2147483648
  %v936 = vsel %vm934, %v922, %v935
  %vm937 = vcmp.eq.s32.totalorder %v932, 2
  %v938 = vxor.u32 %v922, 2147483648
  %v939 = vsel %vm937, %v938, %v930
  %v940 = vsel %vm933, %v936, %v939
  %v941 = vsel %vm931, nan, %v940
  %v942 = vand.u32 2147483647, %v12
  %vm943 = vcmp.le.f32.partialorder %v942, 0.7853982
  %vm944 = vcmp.lt.s32.totalorder %v12, 0
  %v945 = vand.u32 %v12, 2139095040
  %v946 = vshrl.u32 %v945, 23
  %v947 = vsub.s32 %v946, 127
  %v948 = vand.u32 2147483647, %v12
  %v949 = vand.u32 %v948, 8388607
  %v950 = vor.u32 %v949, 8388608
  %v951 = vsub.s32 0, %v950
  %v952 = vadd.s32 %v947, 1
  %vm953 = vcmp.gt.s32.totalorder %v952, 0
  %v954 = vsel %vm953, %v952, 0
  %v955 = vshrl.u32 %v954, 5
  %v956 = vand.u32 %v954, 31
  %v957 = vsub.s32 32, %v956
  %v958 = vshrl.u32 683565275, %v957
  %v959 = vshll.u32 683565275, %v956
  %v960 = vshrl.u32 2475754826, %v957
  %v961 = vor.u32 %v959, %v960
  %v962 = vshll.u32 2475754826, %v956
  %v963 = vshrl.u32 2131351028, %v957
  %v964 = vor.u32 %v962, %v963
  %v965 = vshll.u32 2131351028, %v956
  %v966 = vshrl.u32 2102212464, %v957
  %v967 = vor.u32 %v965, %v966
  %v968 = vshll.u32 2102212464, %v956
  %v969 = vshrl.u32 920167782, %v957
  %v970 = vor.u32 %v968, %v969
  %v971 = vshll.u32 920167782, %v956
  %v972 = vshrl.u32 1326507024, %v957
  %v973 = vor.u32 %v971, %v972
  %vm974 = vcmp.lt.s32.totalorder %v955, 1
  %vm975 = vcmp.lt.s32.totalorder %v955, 2
  %vm976 = vcmp.lt.s32.totalorder %v955, 3
  %vm977 = vcmp.lt.s32.totalorder %v955, 4
  %v978 = vsel %vm974, %v958, %v961
  %v979 = vsel %vm977, %v967, 2102212464
  %v980 = vsel %vm976, %v964, %v979
  %v981 = vsel %vm975, %v978, %v980
  %v982 = vsel %vm974, %v961, %v964
  %v983 = vsel %vm977, %v970, 920167782
  %v984 = vsel %vm976, %v967, %v983
  %v985 = vsel %vm975, %v982, %v984
  %v986 = vsel %vm974, %v964, %v967
  %v987 = vsel %vm977, %v973, 1326507024
  %v988 = vsel %vm976, %v970, %v987
  %v989 = vsel %vm975, %v986, %v988
  %v990 = vshll.u32 %v950, 8
  %v991 = vand.u32 %v990, 65535
  %v992 = vshrl.u32 %v990, 16
  %v993 = vand.u32 %v989, 65535
  %v994 = vshrl.u32 %v989, 16
  %v995 = vmul.u32 %v991, %v993
  %v996 = vmul.u32 %v991, %v994
  %v997 = vmul.u32 %v992, %v993
  %v998 = vmul.u32 %v992, %v994
  %v999 = vshll.u32 %v996, 16
  %v1000 = vshrl.u32 %v996, 16
  %v1001 = vshll.u32 %v997, 16
  %v1002 = vshrl.u32 %v997, 16
  %vm1003 = vc.u32 %v995, %v999
  %v1004 = vsel %vm1003, 1, 0
  %v1005 = vadd.s32 %v995, %v999
  %v1006 = vadd.s32 %v998, %v1004
  %vm1007 = vc.u32 %v1005, %v1001
  %v1008 = vsel %vm1007, 1, 0
  %v1009 = vadd.s32 %v1005, %v1001
  %v1010 = vadd.s32 %v1006, %v1008
  %v1011 = vadd.s32 %v1010, %v1000
  %v1012 = vadd.s32 %v1011, %v1002
  %v1013 = vand.u32 %v990, 65535
  %v1014 = vshrl.u32 %v990, 16
  %v1015 = vand.u32 %v985, 65535
  %v1016 = vshrl.u32 %v985, 16
  %v1017 = vmul.u32 %v1013, %v1015
  %v1018 = vmul.u32 %v1013, %v1016
  %v1019 = vmul.u32 %v1014, %v1015
  %v1020 = vmul.u32 %v1014, %v1016
  %v1021 = vshll.u32 %v1018, 16
  %v1022 = vshrl.u32 %v1018, 16
  %v1023 = vshll.u32 %v1019, 16
  %v1024 = vshrl.u32 %v1019, 16
  %vm1025 = vc.u32 %v1017, %v1021
  %v1026 = vsel %vm1025, 1, 0
  %v1027 = vadd.s32 %v1017, %v1021
  %v1028 = vadd.s32 %v1020, %v1026
  %vm1029 = vc.u32 %v1027, %v1023
  %v1030 = vsel %vm1029, 1, 0
  %v1031 = vadd.s32 %v1027, %v1023
  %v1032 = vadd.s32 %v1028, %v1030
  %v1033 = vadd.s32 %v1032, %v1022
  %v1034 = vadd.s32 %v1033, %v1024
  %v1035 = vmul.u32 %v990, %v981
  %v1036 = vadd.s32 %v1012, %v1031
  %vm1037 = vc.u32 %v1012, %v1031
  %v1038 = vadd.s32 %v1034, 1
  %v1039 = vsel %vm1037, %v1038, %v1034
  %v1040 = vadd.s32 %v1035, %v1039
  %v1041 = vadd.s32 %v1040, 536870912
  %v1042 = vshrl.u32 %v1041, 30
  %v1043 = vshll.u32 %v1042, 30
  %v1044 = vsub.s32 %v1040, %v1043
  %vm1045 = vcmp.lt.s32.totalorder %v1044, 0
  %v1046 = vsub.s32 0, %v1044
  %v1047 = vsel %vm1045, %v1046, %v1044
  %v1048 = vclz %v1047
  %v1049 = vsub.s32 %v1048, 2
  %vm1050 = vcmp.gt.s32.totalorder 0, %v1049
  %v1051 = vsel %vm1050, 0, %v1049
  %v1052 = vsub.s32 32, %v1051
  %v1053 = vshll.u32 %v1044, %v1051
  %v1054 = vshrl.u32 %v1036, %v1052
  %v1055 = vor.u32 %v1053, %v1054
  %v1056 = vsub.s32 4294967266, %v1051
  %v1057 = vadd.s32 %v1056, 127
  %v1058 = vshll.u32 %v1057, 23
  %v1059 = vor.u32 4788187, %v1058
  %v1060 = vand.u32 2147483647, %v1059
  %v1062 = vcvt.s32.f32 %v1055
  %v1063 = vmul.f32 %v1062, %v1060
  %v1064 = vxor.u32 %v1063, 2147483648
  %v1065 = vsel %vm944, %v1064, %v1063
  %v1066 = vsub.s32 4, %v1042
  %v1067 = vsel %vm944, %v1066, %v1042
  %v1068 = vsel %vm943, %v12, %v1065
  %v1069 = vsel %vm943, 0, %v1067
  %v1070 = vmul.f32 %v1068, %v1068
  %v1071 = vmul.f32 %v1070, -0.001358992
  %v1072 = vadd.f32 %v1071, 0.041655596
  %v1073 = vmul.f32 %v1070, %v1072
  %v1074 = vadd.f32 %v1073, -0.4999988
  %v1075 = vmul.f32 %v1070, %v1074
  %v1076 = vadd.f32 1.0, %v1075
  %v1077 = vmul.f32 %v1068, %v1068
  %v1078 = vmul.f32 %v1077, -0.00019511016
  %v1079 = vadd.f32 %v1078, 0.008332121
  %v1080 = vmul.f32 %v1077, %v1079
  %v1081 = vadd.f32 %v1080, -0.16666654
  %v1082 = vmul.f32 %v1077, %v1081
  %v1083 = vadd.f32 %v1082, 1.0
  %v1084 = vmul.f32 %v1083, %v1068
  %vm1085 = vweird.f32 %v12
  %v1086 = vand.u32 %v1069, 3
  %vm1087 = vcmp.lt.s32.totalorder %v1086, 2
  %vm1088 = vcmp.eq.s32.totalorder %v1086, 0
  %v1089 = vxor.u32 %v1084, 2147483648
  %v1090 = vsel %vm1088, %v1076, %v1089
  %vm1091 = vcmp.eq.s32.totalorder %v1086, 2
  %v1092 = vxor.u32 %v1076, 2147483648
  %v1093 = vsel %vm1091, %v1092, %v1084
  %v1094 = vsel %vm1087, %v1090, %v1093
  %v1095 = vsel %vm1085, nan, %v1094
  %v1096 = vand.u32 2147483647, %v13
  %vm1097 = vcmp.le.f32.partialorder %v1096, 0.7853982
  %vm1098 = vcmp.lt.s32.totalorder %v13, 0
  %v1099 = vand.u32 %v13, 2139095040
  %v1100 = vshrl.u32 %v1099, 23
  %v1101 = vsub.s32 %v1100, 127
  %v1102 = vand.u32 2147483647, %v13
  %v1103 = vand.u32 %v1102, 8388607
  %v1104 = vor.u32 %v1103, 8388608
  %v1105 = vsub.s32 0, %v1104
  %v1106 = vadd.s32 %v1101, 1
  %vm1107 = vcmp.gt.s32.totalorder %v1106, 0
  %v1108 = vsel %vm1107, %v1106, 0
  %v1109 = vshrl.u32 %v1108, 5
  %v1110 = vand.u32 %v1108, 31
  %v1111 = vsub.s32 32, %v1110
  %v1112 = vshrl.u32 683565275, %v1111
  %v1113 = vshll.u32 683565275, %v1110
  %v1114 = vshrl.u32 2475754826, %v1111
  %v1115 = vor.u32 %v1113, %v1114
  %v1116 = vshll.u32 2475754826, %v1110
  %v1117 = vshrl.u32 2131351028, %v1111
  %v1118 = vor.u32 %v1116, %v1117
  %v1119 = vshll.u32 2131351028, %v1110
  %v1120 = vshrl.u32 2102212464, %v1111
  %v1121 = vor.u32 %v1119, %v1120
  %v1122 = vshll.u32 2102212464, %v1110
  %v1123 = vshrl.u32 920167782, %v1111
  %v1124 = vor.u32 %v1122, %v1123
  %v1125 = vshll.u32 920167782, %v1110
  %v1126 = vshrl.u32 1326507024, %v1111
  %v1127 = vor.u32 %v1125, %v1126
  %vm1128 = vcmp.lt.s32.totalorder %v1109, 1
  %vm1129 = vcmp.lt.s32.totalorder %v1109, 2
  %vm1130 = vcmp.lt.s32.totalorder %v1109, 3
  %vm1131 = vcmp.lt.s32.totalorder %v1109, 4
  %v1132 = vsel %vm1128, %v1112, %v1115
  %v1133 = vsel %vm1131, %v1121, 2102212464
  %v1134 = vsel %vm1130, %v1118, %v1133
  %v1135 = vsel %vm1129, %v1132, %v1134
  %v1136 = vsel %vm1128, %v1115, %v1118
  %v1137 = vsel %vm1131, %v1124, 920167782
  %v1138 = vsel %vm1130, %v1121, %v1137
  %v1139 = vsel %vm1129, %v1136, %v1138
  %v1140 = vsel %vm1128, %v1118, %v1121
  %v1141 = vsel %vm1131, %v1127, 1326507024
  %v1142 = vsel %vm1130, %v1124, %v1141
  %v1143 = vsel %vm1129, %v1140, %v1142
  %v1144 = vshll.u32 %v1104, 8
  %v1145 = vand.u32 %v1144, 65535
  %v1146 = vshrl.u32 %v1144, 16
  %v1147 = vand.u32 %v1143, 65535
  %v1148 = vshrl.u32 %v1143, 16
  %v1149 = vmul.u32 %v1145, %v1147
  %v1150 = vmul.u32 %v1145, %v1148
  %v1151 = vmul.u32 %v1146, %v1147
  %v1152 = vmul.u32 %v1146, %v1148
  %v1153 = vshll.u32 %v1150, 16
  %v1154 = vshrl.u32 %v1150, 16
  %v1155 = vshll.u32 %v1151, 16
  %v1156 = vshrl.u32 %v1151, 16
  %vm1157 = vc.u32 %v1149, %v1153
  %v1158 = vsel %vm1157, 1, 0
  %v1159 = vadd.s32 %v1149, %v1153
  %v1160 = vadd.s32 %v1152, %v1158
  %vm1161 = vc.u32 %v1159, %v1155
  %v1162 = vsel %vm1161, 1, 0
  %v1163 = vadd.s32 %v1159, %v1155
  %v1164 = vadd.s32 %v1160, %v1162
  %v1165 = vadd.s32 %v1164, %v1154
  %v1166 = vadd.s32 %v1165, %v1156
  %v1167 = vand.u32 %v1144, 65535
  %v1168 = vshrl.u32 %v1144, 16
  %v1169 = vand.u32 %v1139, 65535
  %v1170 = vshrl.u32 %v1139, 16
  %v1171 = vmul.u32 %v1167, %v1169
  %v1172 = vmul.u32 %v1167, %v1170
  %v1173 = vmul.u32 %v1168, %v1169
  %v1174 = vmul.u32 %v1168, %v1170
  %v1175 = vshll.u32 %v1172, 16
  %v1176 = vshrl.u32 %v1172, 16
  %v1177 = vshll.u32 %v1173, 16
  %v1178 = vshrl.u32 %v1173, 16
  %vm1179 = vc.u32 %v1171, %v1175
  %v1180 = vsel %vm1179, 1, 0
  %v1181 = vadd.s32 %v1171, %v1175
  %v1182 = vadd.s32 %v1174, %v1180
  %vm1183 = vc.u32 %v1181, %v1177
  %v1184 = vsel %vm1183, 1, 0
  %v1185 = vadd.s32 %v1181, %v1177
  %v1186 = vadd.s32 %v1182, %v1184
  %v1187 = vadd.s32 %v1186, %v1176
  %v1188 = vadd.s32 %v1187, %v1178
  %v1189 = vmul.u32 %v1144, %v1135
  %v1190 = vadd.s32 %v1166, %v1185
  %vm1191 = vc.u32 %v1166, %v1185
  %v1192 = vadd.s32 %v1188, 1
  %v1193 = vsel %vm1191, %v1192, %v1188
  %v1194 = vadd.s32 %v1189, %v1193
  %v1195 = vadd.s32 %v1194, 536870912
  %v1196 = vshrl.u32 %v1195, 30
  %v1197 = vshll.u32 %v1196, 30
  %v1198 = vsub.s32 %v1194, %v1197
  %vm1199 = vcmp.lt.s32.totalorder %v1198, 0
  %v1200 = vsub.s32 0, %v1198
  %v1201 = vsel %vm1199, %v1200, %v1198
  %v1202 = vclz %v1201
  %v1203 = vsub.s32 %v1202, 2
  %vm1204 = vcmp.gt.s32.totalorder 0, %v1203
  %v1205 = vsel %vm1204, 0, %v1203
  %v1206 = vsub.s32 32, %v1205
  %v1207 = vshll.u32 %v1198, %v1205
  %v1208 = vshrl.u32 %v1190, %v1206
  %v1209 = vor.u32 %v1207, %v1208
  %v1210 = vsub.s32 4294967266, %v1205
  %v1211 = vadd.s32 %v1210, 127
  %v1212 = vshll.u32 %v1211, 23
  %v1213 = vor.u32 4788187, %v1212
  %v1214 = vand.u32 2147483647, %v1213
  %v1216 = vcvt.s32.f32 %v1209
  %v1217 = vmul.f32 %v1216, %v1214
  %v1218 = vxor.u32 %v1217, 2147483648
  %v1219 = vsel %vm1098, %v1218, %v1217
  %v1220 = vsub.s32 4, %v1196
  %v1221 = vsel %vm1098, %v1220, %v1196
  %v1222 = vsel %vm1097, %v13, %v1219
  %v1223 = vsel %vm1097, 0, %v1221
  %v1224 = vmul.f32 %v1222, %v1222
  %v1225 = vmul.f32 %v1224, -0.001358992
  %v1226 = vadd.f32 %v1225, 0.041655596
  %v1227 = vmul.f32 %v1224, %v1226
  %v1228 = vadd.f32 %v1227, -0.4999988
  %v1229 = vmul.f32 %v1224, %v1228
  %v1230 = vadd.f32 1.0, %v1229
  %v1231 = vmul.f32 %v1222, %v1222
  %v1232 = vmul.f32 %v1231, -0.00019511016
  %v1233 = vadd.f32 %v1232, 0.008332121
  %v1234 = vmul.f32 %v1231, %v1233
  %v1235 = vadd.f32 %v1234, -0.16666654
  %v1236 = vmul.f32 %v1231, %v1235
  %v1237 = vadd.f32 %v1236, 1.0
  %v1238 = vmul.f32 %v1237, %v1222
  %vm1239 = vweird.f32 %v13
  %v1240 = vand.u32 %v1223, 3
  %vm1241 = vcmp.lt.s32.totalorder %v1240, 2
  %vm1242 = vcmp.eq.s32.totalorder %v1240, 0
  %v1243 = vxor.u32 %v1238, 2147483648
  %v1244 = vsel %vm1242, %v1230, %v1243
  %vm1245 = vcmp.eq.s32.totalorder %v1240, 2
  %v1246 = vxor.u32 %v1230, 2147483648
  %v1247 = vsel %vm1245, %v1246, %v1238
  %v1248 = vsel %vm1241, %v1244, %v1247
  %v1249 = vsel %vm1239, nan, %v1248
  %v1250 = vlaneseq
  %v1251 = vand.u32 %v1250, 127
  %v1252 = vadd.s32 %v1251, 128
  %v1253 = vand.u32 %v1251, 1
  %v1254 = vand.u32 %v1252, 1
  %vm1255 = vcmp.eq.s32.totalorder %v1253, 0
  %vm1256 = vcmp.eq.s32.totalorder %v1254, 0
  %v1257 = vsel %vm1255, %v168, %v787
  %v1258 = vsel %vm1256, %v323, %v941
  %v1259 = vsel %vm1255, %v478, %v1095
  %v1260 = vsel %vm1256, %v633, %v1249
  %1261 = vrot.lane.b32.xlu0 %v1257, 127
  %v1262 = vpop.permute.xlu0 %1261
  %1263 = vrot.lane.b32.xlu0 %v1259, 127
  %v1264 = vpop.permute.xlu0 %1263
  %1265 = vrot.lane.b32.xlu0 %v1258, 127
  %v1266 = vpop.permute.xlu0 %1265
  %1267 = vrot.lane.b32.xlu0 %v1260, 127
  %v1268 = vpop.permute.xlu0 %1267
  %vm1269 = vcmp.lt.s32.totalorder %v1251, 127
  %v1270 = vsel %vm1269, %v1262, %v1266
  %v1271 = vsel %vm1269, %v1264, %v1268
  %v1272 = vsel %vm1269, %v1266, %v1262
  %v1273 = vsel %vm1269, %v1268, %v1264
  %1274 = vrot.lane.b32.xlu0 %v1257, 1
  %v1275 = vpop.permute.xlu0 %1274
  %1276 = vrot.lane.b32.xlu0 %v1259, 1
  %v1277 = vpop.permute.xlu0 %1276
  %1278 = vrot.lane.b32.xlu0 %v1258, 1
  %v1279 = vpop.permute.xlu0 %1278
  %1280 = vrot.lane.b32.xlu0 %v1260, 1
  %v1281 = vpop.permute.xlu0 %1280
  %vm1282 = vcmp.lt.s32.totalorder %v1251, 1
  %v1283 = vsel %vm1282, %v1275, %v1279
  %v1284 = vsel %vm1282, %v1277, %v1281
  %v1285 = vsel %vm1282, %v1279, %v1275
  %v1286 = vsel %vm1282, %v1281, %v1277
  %v1287 = vsel %vm1255, %v1270, %v1285
  %v1288 = vsel %vm1256, %v1272, %v1283
  %v1289 = vsel %vm1255, %v1271, %v1286
  %v1290 = vsel %vm1256, %v1273, %v1284
  %v1291 = vmul.f32 %v168, %v1287
  %v1292 = vmul.f32 %v323, %v1288
  %v1293 = vmul.f32 %v478, %v1289
  %v1294 = vmul.f32 %v633, %v1290
  %1295 = vrot.lane.b32.xlu0 %v787, 1
  %v1296 = vpop.permute.xlu0 %1295
  %1297 = vrot.lane.b32.xlu0 %v1095, 1
  %v1298 = vpop.permute.xlu0 %1297
  %1299 = vrot.lane.b32.xlu0 %v941, 1
  %v1300 = vpop.permute.xlu0 %1299
  %1301 = vrot.lane.b32.xlu0 %v1249, 1
  %v1302 = vpop.permute.xlu0 %1301
  %v1303 = vsel %vm1282, %v1296, %v1300
  %v1304 = vsel %vm1282, %v1298, %v1302
  %v1305 = vsel %vm1282, %v1300, %v1296
  %v1306 = vsel %vm1282, %v1302, %v1298
  %v1307 = vsel %vm1255, %v787, %v1305
  %v1308 = vsel %vm1256, %v941, %v1303
  %v1309 = vsel %vm1255, %v1095, %v1306
  %v1310 = vsel %vm1256, %v1249, %v1304
  %1311 = vst [vmem:[%s1] sm:$0xff] %v1291
  %1312 = vst [vmem:[%s1 + $0x8] sm:$0xff] %v1292
  %1313 = vst [vmem:[%s1 + $0x10] sm:$0xff] %v1293
  %1314 = vst [vmem:[%s1 + $0x18] sm:$0xff] %v1294
  %1315 = vst [vmem:[%s2] sm:$0xff] %v1307
  %1316 = vst [vmem:[%s2 + $0x8] sm:$0xff] %v1308
  %1317 = vst [vmem:[%s2 + $0x10] sm:$0xff] %v1309
  %1318 = vst [vmem:[%s2 + $0x18] sm:$0xff] %v1310
  // Predicated region
  $region6: #{surface_forward.1} parent=0 // pred_check
    _
  $region7: #{surface_forward.1} parent=0 // pred_check_branch
    %1320 = sbr.rel (0) target = $region9
  $region8: #{surface_forward.1} parent=0 // pred_region
    _
  $region9: #{surface_forward.1} parent=0 // pred_fallthru
    _
  // Predicated region
  $region10: #{surface_forward.1} parent=0 // pred_check
    _
  $region11: #{surface_forward.1} parent=0 // pred_check_branch
    %1322 = sbr.rel (0) target = $region13
  $region12: #{surface_forward.1} parent=0 // pred_region
    _
  $region13: #{surface_forward.1} parent=0 // pred_fallthru
    _
  // Predicated region
  $region14: #{surface_forward.1} parent=0 // pred_check
    _
  $region15: #{surface_forward.1} parent=0 // pred_check_branch
    %1324 = sbr.rel (0) target = $region17
  $region16: #{surface_forward.1} parent=0 // pred_region
    _
  $region17: #{surface_forward.1} parent=0 // pred_fallthru
    _
  // Predicated region
  $region18: #{surface_forward.1} parent=0 // pred_check
    _
  $region19: #{surface_forward.1} parent=0 // pred_check_branch
    %1326 = sbr.rel (0) target = $region21
  $region20: #{surface_forward.1} parent=0 // pred_region
    _
  $region21: #{surface_forward.1} parent=0 // pred_fallthru
    _

</llo_original>
